<compile_context>
chip_gen: v6e
topology: v6e:2x2x1
jax: 0.10.0
libtpu: 0.0.40
codegen_flags: <defaults>
</compile_context>

<pallas_src>
import math

import jax
import jax.numpy as jnp
from jax import lax
from jax.experimental import pallas as pl
from jax.experimental.pallas import tpu as pltpu

BN_EPS = 1e-3     # ultralytics Conv uses nn.BatchNorm2d(c2, eps=0.001)
LANE = 128        # TPU lane width: channel dims padded to a multiple of this
TILE_M = 256      # rows (N*H*W) per grid step.  512-1024 is fine on v6e
                  # (128 MiB VMEM); keep <=512 on v7x (64 MiB VMEM per TC).


def _round_up(x, m):
    return ((x + m - 1) // m) * m


def _silu_f32(y):
    # exp lands on the EUP slot; essentially free under the MXU/DMA critical path.
    return y * jax.nn.sigmoid(y)


def _compiler_params():
    # "parallel" on the M axis -> sharded across the 2 TensorCores on v7x,
    # harmless no-op on single-TC v5e/v6e.  VMEM limit raised with headroom
    # (tiles here are far below the v7x 64 MiB/TC budget).
    return pltpu.CompilerParams(
        dimension_semantics=("parallel",),
        vmem_limit_bytes=64 * 1024 * 1024,
    )


# ---------------------------- Pallas kernels ----------------------------

def _conv_silu_kernel(x_ref, w_ref, b_ref, o_ref):
    # (TILE_M, K) @ (K, Cout) + bias, SiLU, store (fp32 accumulation).
    acc = jnp.dot(x_ref[...], w_ref[...], preferred_element_type=jnp.float32)
    o_ref[...] = _silu_f32(acc + b_ref[...]).astype(o_ref.dtype)


def _conv_silu_residual_kernel(x_ref, r_ref, w_ref, b_ref, o_ref):
    # Bottleneck shortcut fused: residual added AFTER the activation
    # (x + cv2(cv1(x)) semantics of the module).
    acc = jnp.dot(x_ref[...], w_ref[...], preferred_element_type=jnp.float32)
    y = _silu_f32(acc + b_ref[...]) + r_ref[...].astype(jnp.float32)
    o_ref[...] = y.astype(o_ref.dtype)


def _make_cv1_kernel(c_half):
    # 1x1 conv producing BOTH C2f chunks: the channel split is done in-kernel
    # on a 128-lane boundary, so no separate HBM slice/copy is needed.
    def kernel(x_ref, w_ref, b_ref, o0_ref, o1_ref):
        acc = jnp.dot(x_ref[...], w_ref[...], preferred_element_type=jnp.float32)
        y = _silu_f32(acc + b_ref[...])
        o0_ref[...] = y[:, :c_half].astype(o0_ref.dtype)
        o1_ref[...] = y[:, c_half:].astype(o1_ref.dtype)
    return kernel


def _make_cv2_kernel(n_chunks):
    # cv2 fused over the (2+n) C2f chunks: per-chunk matmuls summed into one
    # fp32 accumulator -> replaces the jnp.concatenate HBM round-trip.
    def kernel(*refs):
        x_refs = refs[:n_chunks]
        w_ref, b_ref, o_ref = refs[n_chunks:n_chunks + 3]
        acc = jnp.dot(x_refs[0][...], w_ref[0],
                      preferred_element_type=jnp.float32)
        for j in range(1, n_chunks):
            acc = acc + jnp.dot(x_refs[j][...], w_ref[j],
                                preferred_element_type=jnp.float32)
        o_ref[...] = _silu_f32(acc + b_ref[...]).astype(o_ref.dtype)
    return kernel


# --------------------------- pallas_call wrappers ------------------------

def _fused_matmul_silu(x2d, w, b, residual=None, tile_m=TILE_M):
    """y = SiLU(x2d @ w + b) [+ residual], tiled over M with resident weights."""
    M, K = x2d.shape
    cout = w.shape[1]
    tm = min(tile_m, M)
    grid = (pl.cdiv(M, tm),)

    in_specs = [pl.BlockSpec((tm, K), lambda i: (i, 0))]
    args = [x2d]
    if residual is not None:
        in_specs.append(pl.BlockSpec((tm, cout), lambda i: (i, 0)))
        args.append(residual)
    in_specs += [pl.BlockSpec((K, cout), lambda i: (0, 0)),     # resident weight
                 pl.BlockSpec((1, cout), lambda i: (0, 0))]     # resident bias (fp32)
    args += [w, b.reshape(1, cout)]

    kernel = _conv_silu_residual_kernel if residual is not None else _conv_silu_kernel
    return pl.pallas_call(
        kernel,
        grid=grid,
        in_specs=in_specs,
        out_specs=pl.BlockSpec((tm, cout), lambda i: (i, 0)),
        out_shape=jax.ShapeDtypeStruct((M, cout), x2d.dtype),
        compiler_params=_compiler_params(),
    )(*args)


def _cv1_call(x2d, w, b, c_half, tile_m=TILE_M):
    M, K = x2d.shape
    cout = w.shape[1]            # == 2 * c_half
    tm = min(tile_m, M)
    grid = (pl.cdiv(M, tm),)
    out_sd = jax.ShapeDtypeStruct((M, c_half), x2d.dtype)
    return pl.pallas_call(
        _make_cv1_kernel(c_half),
        grid=grid,
        in_specs=[pl.BlockSpec((tm, K), lambda i: (i, 0)),
                  pl.BlockSpec((K, cout), lambda i: (0, 0)),
                  pl.BlockSpec((1, cout), lambda i: (0, 0))],
        out_specs=(pl.BlockSpec((tm, c_half), lambda i: (i, 0)),
                   pl.BlockSpec((tm, c_half), lambda i: (i, 0))),
        out_shape=(out_sd, out_sd),
        compiler_params=_compiler_params(),
    )(x2d, w, b.reshape(1, cout))


def _cv2_call(chunks, w, b, tile_m=TILE_M):
    M, c_p = chunks[0].shape
    n_chunks, _, c2_p = w.shape
    tm = min(tile_m, M)
    grid = (pl.cdiv(M, tm),)
    in_specs = [pl.BlockSpec((tm, c_p), lambda i: (i, 0)) for _ in range(n_chunks)]
    in_specs += [pl.BlockSpec((n_chunks, c_p, c2_p), lambda i: (0, 0, 0)),
                 pl.BlockSpec((1, c2_p), lambda i: (0, 0))]
    return pl.pallas_call(
        _make_cv2_kernel(n_chunks),
        grid=grid,
        in_specs=in_specs,
        out_specs=pl.BlockSpec((tm, c2_p), lambda i: (i, 0)),
        out_shape=jax.ShapeDtypeStruct((M, c2_p), chunks[0].dtype),
        compiler_params=_compiler_params(),
    )(*chunks, w, b.reshape(1, c2_p))


# ----------------------- weight packing (BN folded) ----------------------

def _pack_cv1(w, b, c, c_p):
    # (2c, c1, 1, 1) -> (c1, 2*c_p).  Chunk j's real outputs occupy columns
    # [j*c_p, j*c_p + c) so the C2f split lands on a 128-lane boundary.
    w11 = w[:, :, 0, 0].T                                   # (c1, 2c)
    blocks = [jnp.pad(w11[:, j * c:(j + 1) * c], ((0, 0), (0, c_p - c)))
              for j in range(2)]
    bias = [jnp.pad(b[j * c:(j + 1) * c], (0, c_p - c)) for j in range(2)]
    return jnp.concatenate(blocks, axis=1), jnp.concatenate(bias)


def _pack_3x3(w, b, c, c_p, k_pad):
    # (c, c, 3, 3) -> (k_pad, c_p), rows ordered (ky, kx, cin) to match im2col.
    w9 = jnp.transpose(w, (2, 3, 1, 0)).reshape(9 * c, c)
    return (jnp.pad(w9, ((0, k_pad - 9 * c), (0, c_p - c))),
            jnp.pad(b, (0, c_p - c)))


def _pack_cv2(w, b, c, c_p, c2, c2_p, n_chunks):
    # (c2, n_chunks*c, 1, 1) -> (n_chunks, c_p, c2_p): one weight slab per chunk.
    w11 = w[:, :, 0, 0]                                     # (c2, n_chunks*c)
    blocks = [jnp.pad(w11[:, j * c:(j + 1) * c].T,
                      ((0, c_p - c), (0, c2_p - c2)))
              for j in range(n_chunks)]
    return jnp.stack(blocks, axis=0), jnp.pad(b, (0, c2_p - c2))


# ----------------------------- glue (XLA) --------------------------------

def _im2col_3x3(chunk_2d, N, H, W, c_real, k_pad):
    """(M, c_p) lane-padded chunk -> (M, k_pad) im2col, K = 9*c_real (+zero pad).

    The 3x3 taps are folded into the contraction dim so the kernel does ONE
    matmul with K = 9*c_real instead of 9 small-K matmuls.
    """
    c_p = chunk_2d.shape[-1]
    x = chunk_2d.reshape(N, H, W, c_p)[..., :c_real]
    xp = jnp.pad(x, ((0, 0), (1, 1), (1, 1), (0, 0)))
    taps = [xp[:, dy:dy + H, dx:dx + W, :] for dy in range(3) for dx in range(3)]
    cols = jnp.concatenate(taps, axis=-1).reshape(N * H * W, 9 * c_real)
    return jnp.pad(cols, ((0, 0), (0, k_pad - 9 * c_real)))


# -------------------- deterministic parameter setup ----------------------

def _init_conv_bn(key, cin, cout, k):
    """Conv2d(bias=False) + BatchNorm2d (eval), BN folded into (weight, bias)."""
    kw, kg, kb, km, kv = jax.random.split(key, 5)
    w = jax.random.normal(kw, (cout, cin, k, k), jnp.float32) \
        * (1.0 / math.sqrt(cin * k * k))
    gamma = 1.0 + 0.1 * jax.random.normal(kg, (cout,), jnp.float32)
    beta = 0.1 * jax.random.normal(kb, (cout,), jnp.float32)
    mean = 0.1 * jax.random.normal(km, (cout,), jnp.float32)
    var = 0.5 + 0.5 * jnp.abs(jax.random.normal(kv, (cout,), jnp.float32))
    scale = gamma / jnp.sqrt(var + BN_EPS)
    return w * scale[:, None, None, None], beta - mean * scale


def init_c2f_params(key, c1, c2, n=1, e=0.5):
    c = int(c2 * e)
    keys = jax.random.split(key, 2 + 2 * n)
    return {
        "c1": c1, "c2": c2, "c": c, "n": n,
        "cv1": _init_conv_bn(keys[0], c1, 2 * c, 1),
        "cv2": _init_conv_bn(keys[1], (2 + n) * c, c2, 1),
        "m": [(_init_conv_bn(keys[2 + 2 * i], c, c, 3),
               _init_conv_bn(keys[3 + 2 * i], c, c, 3)) for i in range(n)],
    }


# ------------------------------ C2f forward ------------------------------

def c2f_forward(params, x_nchw, shortcut=False, compute_dtype=jnp.bfloat16,
                tile_m=TILE_M):
    c, c1, c2, n = params["c"], params["c1"], params["c2"], params["n"]
    c_p = _round_up(c, LANE)
    c2_p = _round_up(c2, LANE)
    k3 = _round_up(9 * c, LANE)
    out_dtype = x_nchw.dtype

    x = jnp.transpose(x_nchw, (0, 2, 3, 1))                 # NCHW -> NHWC
    N, H, W, _ = x.shape
    M = N * H * W
    xm = x.reshape(M, c1).astype(compute_dtype)

    # cv1: 1x1 conv + BN + SiLU; split into the two chunks fused in-kernel.
    w1, b1 = params["cv1"]
    w1m, b1v = _pack_cv1(w1, b1, c, c_p)
    y0, y1 = _cv1_call(xm, w1m.astype(compute_dtype), b1v, c_p, tile_m)
    ys = [y0, y1]

    # Bottleneck chain: each 3x3 conv = one K=9c matmul per M-tile; shortcut
    # (if enabled) is fused into the second conv's kernel (added after SiLU).
    for (wa, ba), (wb, bb) in params["m"]:
        wam, bav = _pack_3x3(wa, ba, c, c_p, k3)
        wbm, bbv = _pack_3x3(wb, bb, c, c_p, k3)
        prev = ys[-1]
        t = _fused_matmul_silu(_im2col_3x3(prev, N, H, W, c, k3),
                               wam.astype(compute_dtype), bav, tile_m=tile_m)
        t = _fused_matmul_silu(_im2col_3x3(t, N, H, W, c, k3),
                               wbm.astype(compute_dtype), bbv,
                               residual=prev if shortcut else None,
                               tile_m=tile_m)
        ys.append(t)

    # cv2: 1x1 conv over the (2+n) chunks, concat eliminated (per-chunk matmuls).
    w2, b2 = params["cv2"]
    w2m, b2v = _pack_cv2(w2, b2, c, c_p, c2, c2_p, 2 + n)
    out = _cv2_call(ys, w2m.astype(compute_dtype), b2v, tile_m)     # (M, c2_p)

    out = out[:, :c2].reshape(N, H, W, c2).astype(out_dtype)
    return jnp.transpose(out, (0, 3, 1, 2))                 # NHWC -> NCHW


# --------------------------- plain-JAX reference --------------------------

def _ref_conv(x_nhwc, w, b):
    w_hwio = jnp.transpose(w, (2, 3, 1, 0))
    y = lax.conv_general_dilated(x_nhwc, w_hwio, (1, 1), "SAME",
                                 dimension_numbers=("NHWC", "HWIO", "NHWC"))
    return _silu_f32(y + b)


def c2f_reference(params, x_nchw, shortcut=False):
    x = jnp.transpose(x_nchw, (0, 2, 3, 1))
    c = params["c"]
    w1, b1 = params["cv1"]
    y = _ref_conv(x, w1, b1)
    ys = [y[..., :c], y[..., c:]]
    for (wa, ba), (wb, bb) in params["m"]:
        t = _ref_conv(_ref_conv(ys[-1], wa, ba), wb, bb)
        if shortcut:
            t = ys[-1] + t
        ys.append(t)
    w2, b2 = params["cv2"]
    out = _ref_conv(jnp.concatenate(ys, axis=-1), w2, b2)
    return jnp.transpose(out, (0, 3, 1, 2))


if __name__ == "__main__":
    key = jax.random.PRNGKey(0)
    kx, kp = jax.random.split(key)
    N, C1, H, W = 2, 4, 16, 16
    C2 = 4
    x = jax.random.normal(kx, (N, C1, H, W), jnp.float32)
    params = init_c2f_params(kp, C1, C2, n=1)   # C2f(c1=4, c2=4, n=1)

    # fp32 compute path: tight check against the lax.conv reference.
    ref = c2f_reference(params, x, shortcut=False)
    out_f32 = jax.block_until_ready(
        c2f_forward(params, x, shortcut=False, compute_dtype=jnp.float32))
    assert out_f32.shape == (N, C2, H, W), out_f32.shape
    assert jnp.allclose(out_f32, ref, atol=1e-3, rtol=1e-3), \
        float(jnp.max(jnp.abs(out_f32 - ref)))

    # fused-shortcut kernel path (fp32).
    ref_sc = c2f_reference(params, x, shortcut=True)
    out_sc = jax.block_until_ready(
        c2f_forward(params, x, shortcut=True, compute_dtype=jnp.float32))
    assert jnp.allclose(out_sc, ref_sc, atol=1e-3, rtol=1e-3), \
        float(jnp.max(jnp.abs(out_sc - ref_sc)))

    # bf16 compute path (performance configuration): loose relative check.
    out_bf16 = jax.block_until_ready(
        c2f_forward(params, x, shortcut=False, compute_dtype=jnp.bfloat16))
    diff = out_bf16.astype(jnp.float32) - ref
    rel = float(jnp.linalg.norm(diff) / (jnp.linalg.norm(ref) + 1e-12))
    assert rel < 5e-2, rel

    print("KERNEL_OK")
</pallas_src>

<mosaic_0001>
module attributes {stable_mosaic.version = 11 : i64} {
  func.func @kernel(%arg0: i32, %arg1: memref<256x4xf32, #tpu.memory_space<vmem>>, %arg2: memref<4x256xf32, #tpu.memory_space<vmem>>, %arg3: memref<1x256xf32, #tpu.memory_space<vmem>>, %arg4: memref<256x128xf32, #tpu.memory_space<vmem>>, %arg5: memref<256x128xf32, #tpu.memory_space<vmem>>) attributes {dimension_semantics = [#tpu.dimension_semantics<parallel>], iteration_bounds = array<i64: 2>, scalar_prefetch = 0 : i64, scratch_operands = 0 : i64, tpu.core_type = #tpu.core_type<tc>, window_params = [{transform_indices = @transform_0, window_bounds = array<i64: 256, 4>}, {pipeline_mode = #tpu.pipeline_mode<synchronous>, transform_indices = @transform_1, window_bounds = array<i64: 4, 256>}, {pipeline_mode = #tpu.pipeline_mode<synchronous>, transform_indices = @transform_2, window_bounds = array<i64: 1, 256>}, {transform_indices = @transform_3, window_bounds = array<i64: 256, 128>}, {transform_indices = @transform_4, window_bounds = array<i64: 256, 128>}]} {
    %c0 = arith.constant 0 : index
    %c0_0 = arith.constant 0 : index
    %0 = vector.load %arg1[%c0, %c0_0] : memref<256x4xf32, #tpu.memory_space<vmem>>, vector<256x4xf32>
    %c0_1 = arith.constant 0 : index
    %c0_2 = arith.constant 0 : index
    %1 = vector.load %arg2[%c0_1, %c0_2] : memref<4x256xf32, #tpu.memory_space<vmem>>, vector<4x256xf32>
    %cst = arith.constant dense<0.000000e+00> : vector<256x256xf32>
    %2 = tpu.matmul %0, %1, %cst {dimension_numbers = #tpu.dot_dimension_numbers<[1], [0], [0], [1], [0, 0, 1, 1], [], []>} : vector<256x4xf32>, vector<4x256xf32>, vector<256x256xf32> -> vector<256x256xf32>
    %c0_3 = arith.constant 0 : index
    %c0_4 = arith.constant 0 : index
    %3 = vector.load %arg3[%c0_3, %c0_4] : memref<1x256xf32, #tpu.memory_space<vmem>>, vector<1x256xf32>
    %4 = vector.broadcast %3 : vector<1x256xf32> to vector<256x256xf32>
    %5 = arith.addf %2, %4 : vector<256x256xf32>
    %6 = arith.negf %5 : vector<256x256xf32>
    %7 = math.exp %6 : vector<256x256xf32>
    %cst_5 = arith.constant 1.000000e+00 : f32
    %8 = vector.broadcast %cst_5 : f32 to vector<256x256xf32>
    %9 = arith.addf %8, %7 : vector<256x256xf32>
    %10 = arith.divf %8, %9 : vector<256x256xf32>
    %11 = arith.mulf %5, %10 : vector<256x256xf32>
    %12 = vector.extract_strided_slice %11 {offsets = [0, 0], sizes = [256, 128], strides = [1, 1]} : vector<256x256xf32> to vector<256x128xf32>
    %c0_6 = arith.constant 0 : index
    %c0_7 = arith.constant 0 : index
    %13 = vector.load %arg4[%c0_6, %c0_7] : memref<256x128xf32, #tpu.memory_space<vmem>>, vector<256x128xf32>
    tpu.vector_store %arg4[%c0_6, %c0_7], %12 {strides = array<i32>} : memref<256x128xf32, #tpu.memory_space<vmem>>, vector<256x128xf32>,
    %14 = vector.extract_strided_slice %11 {offsets = [0, 128], sizes = [256, 128], strides = [1, 1]} : vector<256x256xf32> to vector<256x128xf32>
    %c0_8 = arith.constant 0 : index
    %c0_9 = arith.constant 0 : index
    %15 = vector.load %arg5[%c0_8, %c0_9] : memref<256x128xf32, #tpu.memory_space<vmem>>, vector<256x128xf32>
    tpu.vector_store %arg5[%c0_8, %c0_9], %14 {strides = array<i32>} : memref<256x128xf32, #tpu.memory_space<vmem>>, vector<256x128xf32>,
    return
  }
  func.func @transform_0(%arg0: i32) -> (i32, i32) {
    %c0_i32 = arith.constant 0 : i32
    %c0_i32_0 = arith.constant 0 : i32
    return %arg0, %c0_i32 : i32, i32
  }
  func.func @transform_1(%arg0: i32) -> (i32, i32) {
    %c0_i32 = arith.constant 0 : i32
    %c0_i32_0 = arith.constant 0 : i32
    %c0_i32_1 = arith.constant 0 : i32
    return %c0_i32, %c0_i32_0 : i32, i32
  }
  func.func @transform_2(%arg0: i32) -> (i32, i32) {
    %c0_i32 = arith.constant 0 : i32
    %c0_i32_0 = arith.constant 0 : i32
    %c0_i32_1 = arith.constant 0 : i32
    return %c0_i32, %c0_i32_0 : i32, i32
  }
  func.func @transform_3(%arg0: i32) -> (i32, i32) {
    %c0_i32 = arith.constant 0 : i32
    %c0_i32_0 = arith.constant 0 : i32
    return %arg0, %c0_i32 : i32, i32
  }
  func.func @transform_4(%arg0: i32) -> (i32, i32) {
    %c0_i32 = arith.constant 0 : i32
    %c0_i32_0 = arith.constant 0 : i32
    return %arg0, %c0_i32 : i32, i32
  }
}

</mosaic_0001>

<llo_original>
// kernel: tpu_custom_call.1
$region0: #{tpu_custom_call.1}
  #allocation0 [shape = 'u32[]', space=smem, size = 0x4, offset = 0x4, fixed_abs, tag = 'smem constant byte address 0x4 - core index']
  #allocation1 [shape = 'u32[144,128]{1,0:T(1,128)}', space=vmem, size = 0x12000, scoped, tag = 'internal scratch']
  %s0 = inlined_call_operand.vmem [shape: f32[512,4], index: 0, kind: input, shape index: {}]
  %s1 = inlined_call_operand.vmem [shape: f32[4,256], index: 1, kind: input, shape index: {}]
  %s2 = inlined_call_operand.vmem [shape: f32[1,256], index: 2, kind: input, shape index: {}]
  %s3 = inlined_call_operand.hbm [shape: f32[512,128], index: 3, kind: output, shape index: {0}]
  %s4 = inlined_call_operand.hbm [shape: f32[512,128], index: 4, kind: output, shape index: {1}]
  %5 = xla_tuple %s3, %s4
  %s6 = sld [smem:[#allocation0]]
  $region53: #{tpu_custom_call.1} parent=0
    _
  %s8 = ssub.s32 1, %s6
  %s9 = scalar_select 0, %s8, %s6
  $region1: #{tpu_custom_call.1} parent=0
    #allocation2 [shape = 'u8[262144]{0}', space=vmem, size = 0x40000, scoped, tag = 'output window, operand 0']
    #allocation3 [shape = 's32[2]{0}', space=sflag, size = 0x8, scoped, tag = 'scoped memory for tpu_custom_call.1']
    #allocation4 [shape = 'u8[262144]{0}', space=vmem, size = 0x40000, scoped, tag = 'output window, operand 1']
    #allocation5 [shape = 's32[2]{0}', space=sflag, size = 0x8, scoped, tag = 'scoped memory for tpu_custom_call.1']
    %10 = vsyncpa [#allocation3], 0
    %s11 = scalar_lea.sflag [#allocation3], 1
    %12 = vsyncpa %s11, 0
    %13 = vsyncpa [#allocation5], 0
    %s14 = scalar_lea.sflag [#allocation5], 1
    %15 = vsyncpa %s14, 0
    loop: start=0, step=1, limit=4
    $region2: #{tpu_custom_call.1} parent=1 // loop_pre_header
      _
    $region3: #{tpu_custom_call.1} parent=1 // loop_header
      %s17 = sphi 0, %s21
      %p18 = scmp.ge.s32.totalorder %s17, 4
      %s27 = sphi 0, %s29
      %s30 = sphi 0, %s27
      %s31 = sphi 0, %s30
      %s47 = sphi 0, %s31
      %s51 = sphi 0, %s51
      %s53 = sphi 0, %s51
      %s54 = sphi 0, %s53
      %s68 = sphi 0, %s54
      %s72 = sphi 0, %s72
      %s74 = sphi 0, %s72
      %s75 = sphi 0, %s74
      %s89 = sphi 0, %s75
      %s95 = sphi 0, %s97
      %s98 = sphi 0, %s95
      %s99 = sphi 0, %s98
      %s115 = sphi 0, %s99
      %s121 = sphi 0, %s123
      %s124 = sphi 0, %s121
      %s125 = sphi 0, %s124
      %s141 = sphi 0, %s125
    $region4: #{tpu_custom_call.1} parent=1 // loop_header_branch
      %20 = sbr.rel (%p18) target = $region8
    $region5: #{tpu_custom_call.1} parent=1 // loop_body
      %s22 = ssub.s32 %s17, 1
      %s23 = ssub.s32 %s17, 2
      %s24 = sadd.s32 %s17, 1
      %s25 = ssub.s32 %s17, %s24
      %p26 = scmp.eq.s32.totalorder %s25, 0
      %s28 = sadd.s32 %s27, 1
      %s29 = scalar_select %p26, %s27, %s28
      %p32 = pneg %p26
      %p33 = scmp.eq.s32.totalorder %s17, 1
      %p34 = por %p32, %p33
      %p35 = scmp.ne.s32.totalorder %s27, %s30
      %p36 = scmp.eq.s32.totalorder %s17, 0
      %p37 = por %p35, %p36
      %p38 = scmp.ne.s32.totalorder %s27, %s30
      %p39 = scmp.eq.s32.totalorder %s22, 1
      %p40 = por %p38, %p39
      %p41 = scmp.ne.s32.totalorder %s30, %s31
      %p42 = scmp.eq.s32.totalorder %s22, 0
      %p43 = por %p41, %p42
      %p44 = scmp.ne.s32.totalorder %s30, %s31
      %p45 = scmp.eq.s32.totalorder %s23, 1
      %p46 = por %p44, %p45
      %p48 = scmp.ne.s32.totalorder %s31, %s47
      %p49 = scmp.eq.s32.totalorder %s23, 0
      %p50 = por %p48, %p49
      %s52 = sadd.s32 %s51, 1
      %p55 = scmp.eq.s32.totalorder %s17, 1
      %p56 = scmp.ne.s32.totalorder %s51, %s53
      %p57 = scmp.eq.s32.totalorder %s17, 0
      %p58 = por %p56, %p57
      %p59 = scmp.ne.s32.totalorder %s51, %s53
      %p60 = scmp.eq.s32.totalorder %s22, 1
      %p61 = por %p59, %p60
      %p62 = scmp.ne.s32.totalorder %s53, %s54
      %p63 = scmp.eq.s32.totalorder %s22, 0
      %p64 = por %p62, %p63
      %p65 = scmp.ne.s32.totalorder %s53, %s54
      %p66 = scmp.eq.s32.totalorder %s23, 1
      %p67 = por %p65, %p66
      %p69 = scmp.ne.s32.totalorder %s54, %s68
      %p70 = scmp.eq.s32.totalorder %s23, 0
      %p71 = por %p69, %p70
      %s73 = sadd.s32 %s72, 1
      %p76 = scmp.eq.s32.totalorder %s17, 1
      %p77 = scmp.ne.s32.totalorder %s72, %s74
      %p78 = scmp.eq.s32.totalorder %s17, 0
      %p79 = por %p77, %p78
      %p80 = scmp.ne.s32.totalorder %s72, %s74
      %p81 = scmp.eq.s32.totalorder %s22, 1
      %p82 = por %p80, %p81
      %p83 = scmp.ne.s32.totalorder %s74, %s75
      %p84 = scmp.eq.s32.totalorder %s22, 0
      %p85 = por %p83, %p84
      %p86 = scmp.ne.s32.totalorder %s74, %s75
      %p87 = scmp.eq.s32.totalorder %s23, 1
      %p88 = por %p86, %p87
      %p90 = scmp.ne.s32.totalorder %s75, %s89
      %p91 = scmp.eq.s32.totalorder %s23, 0
      %p92 = por %p90, %p91
      %s93 = ssub.s32 %s17, %s24
      %p94 = scmp.eq.s32.totalorder %s93, 0
      %s96 = sadd.s32 %s95, 1
      %s97 = scalar_select %p94, %s95, %s96
      %p100 = pneg %p94
      %p101 = scmp.eq.s32.totalorder %s17, 1
      %p102 = por %p100, %p101
      %p103 = scmp.ne.s32.totalorder %s95, %s98
      %p104 = scmp.eq.s32.totalorder %s17, 0
      %p105 = por %p103, %p104
      %p106 = scmp.ne.s32.totalorder %s95, %s98
      %p107 = scmp.eq.s32.totalorder %s22, 1
      %p108 = por %p106, %p107
      %p109 = scmp.ne.s32.totalorder %s98, %s99
      %p110 = scmp.eq.s32.totalorder %s22, 0
      %p111 = por %p109, %p110
      %p112 = scmp.ne.s32.totalorder %s98, %s99
      %p113 = scmp.eq.s32.totalorder %s23, 1
      %p114 = por %p112, %p113
      %p116 = scmp.ne.s32.totalorder %s99, %s115
      %p117 = scmp.eq.s32.totalorder %s23, 0
      %p118 = por %p116, %p117
      %s119 = ssub.s32 %s17, %s24
      %p120 = scmp.eq.s32.totalorder %s119, 0
      %s122 = sadd.s32 %s121, 1
      %s123 = scalar_select %p120, %s121, %s122
      %p126 = pneg %p120
      %p127 = scmp.eq.s32.totalorder %s17, 1
      %p128 = por %p126, %p127
      %p129 = scmp.ne.s32.totalorder %s121, %s124
      %p130 = scmp.eq.s32.totalorder %s17, 0
      %p131 = por %p129, %p130
      %p132 = scmp.ne.s32.totalorder %s121, %s124
      %p133 = scmp.eq.s32.totalorder %s22, 1
      %p134 = por %p132, %p133
      %p135 = scmp.ne.s32.totalorder %s124, %s125
      %p136 = scmp.eq.s32.totalorder %s22, 0
      %p137 = por %p135, %p136
      %p138 = scmp.ne.s32.totalorder %s124, %s125
      %p139 = scmp.eq.s32.totalorder %s23, 1
      %p140 = por %p138, %p139
      %p142 = scmp.ne.s32.totalorder %s125, %s141
      %p143 = scmp.eq.s32.totalorder %s23, 0
      %p144 = por %p142, %p143
      %p145 = scmp.le.s32.totalorder 1, %s17
      %p146 = scmp.lt.s32.totalorder %s17, 3
      %p147 = pnand %p145, %p146
      %p148 = pneg %p147
      // Predicated region
      $region9: #{tpu_custom_call.1} parent=5 // pred_check
        _
      $region10: #{tpu_custom_call.1} parent=5 // pred_check_branch
        %150 = sbr.rel (%p147) target = $region12
      $region11: #{tpu_custom_call.1} parent=5 // pred_region
        %s151 = ssub.s32 %s17, 1
        // Predicated region
        $region13: #{tpu_custom_call.1} parent=11 // pred_check
          %p152 = pneg %p64
        $region14: #{tpu_custom_call.1} parent=11 // pred_check_branch
          %154 = sbr.rel (%p152) target = $region16
        $region15: #{tpu_custom_call.1} parent=11 // pred_region
          _
        $region16: #{tpu_custom_call.1} parent=11 // pred_fallthru
          _
        // Predicated region
        $region17: #{tpu_custom_call.1} parent=11 // pred_check
          %p155 = pneg %p85
        $region18: #{tpu_custom_call.1} parent=11 // pred_check_branch
          %157 = sbr.rel (%p155) target = $region20
        $region19: #{tpu_custom_call.1} parent=11 // pred_region
          _
        $region20: #{tpu_custom_call.1} parent=11 // pred_fallthru
          _
      $region12: #{tpu_custom_call.1} parent=5 // pred_fallthru
        _
      %p158 = scmp.lt.s32.totalorder %s17, 2
      // Predicated region
      $region21: #{tpu_custom_call.1} parent=5 // pred_check
        %p159 = pneg %p158
      $region22: #{tpu_custom_call.1} parent=5 // pred_check_branch
        %161 = sbr.rel (%p159) target = $region24
      $region23: #{tpu_custom_call.1} parent=5 // pred_region
        // Predicated region
        $region25: #{tpu_custom_call.1} parent=23 // pred_check
          %p162 = pneg %p37
        $region26: #{tpu_custom_call.1} parent=23 // pred_check_branch
          %164 = sbr.rel (%p162) target = $region28
        $region27: #{tpu_custom_call.1} parent=23 // pred_region
          %s165 = smul.u32 32, %s17
          %p166 = scmp.lt.s32.totalorder %s165, 63
          %s167 = scalar_select %p166, %s165, 63
          %s168 = smul.addr %s167, 8
          %s169 = scalar_lea.vmem %s0, %s168
          %s170 = smul.u32 32, %s17
        $region28: #{tpu_custom_call.1} parent=23 // pred_fallthru
          _
      $region24: #{tpu_custom_call.1} parent=5 // pred_fallthru
        _
      %p171 = scmp.le.s32.totalorder 1, %s17
      %p172 = scmp.lt.s32.totalorder %s17, 3
      %p173 = pnand %p171, %p172
      %p174 = pneg %p173
      // Predicated region
      $region29: #{tpu_custom_call.1} parent=5 // pred_check
        _
      $region30: #{tpu_custom_call.1} parent=5 // pred_check_branch
        %176 = sbr.rel (%p173) target = $region32
      $region31: #{tpu_custom_call.1} parent=5 // pred_region
        %s177 = ssub.s32 %s17, 1
        %s178 = smul.u32 32, %s22
        %p179 = scmp.lt.s32.totalorder %s178, 63
        %s180 = scalar_select %p179, %s178, 63
        %s181 = smul.addr %s180, 8
        %s182 = scalar_lea.vmem %s0, %s181
        %p183 = pneg %p43
        %p184 = pneg %p40
        %p185 = pneg %p64
        %p186 = pneg %p61
        %p187 = pneg %p85
        %p188 = pneg %p82
        %p189 = pneg %p111
        %p190 = pneg %p108
        %s191 = sand.u32 %s98, 1
        %s192 = scalar_lea.sflag [#allocation3], %s191
        %s193 = sand.u32 %s98, 1
        %s194 = smul.addr %s193, 256
        %s195 = scalar_lea.vmem [#allocation2], %s194
        %p196 = pneg %p137
        %p197 = pneg %p134
        %s198 = sand.u32 %s124, 1
        %s199 = scalar_lea.sflag [#allocation5], %s198
        %s200 = sand.u32 %s124, 1
        %s201 = smul.addr %s200, 256
        %s202 = scalar_lea.vmem [#allocation4], %s201
        %s203 = smul.u32 32, %s22
        %p204 = scmp.lt.s32.totalorder %s203, 63
        %s205 = scalar_select %p204, %s203, 63
        %s206 = smul.addr %s205, 8
        %s207 = scalar_lea.vmem %s0, %s206
        %s208 = smul.u32 32, %s22
        %s209 = smul.u32 32, %s22
        %s210 = smul.u32 32, %s22
        %v211 = vld [vmem:[%s207] sm:$0xff]
        %v212 = vld [vmem:[%s207 + $0x8] sm:$0xff]
        %v213 = vld [vmem:[%s207 + $0x10] sm:$0xff]
        %v214 = vld [vmem:[%s207 + $0x18] sm:$0xff]
        %v215 = vld [vmem:[%s207 + $0x20] sm:$0xff]
        %v216 = vld [vmem:[%s207 + $0x28] sm:$0xff]
        %v217 = vld [vmem:[%s207 + $0x30] sm:$0xff]
        %v218 = vld [vmem:[%s207 + $0x38] sm:$0xff]
        %v219 = vld [vmem:[%s207 + $0x40] sm:$0xff]
        %v220 = vld [vmem:[%s207 + $0x48] sm:$0xff]
        %v221 = vld [vmem:[%s207 + $0x50] sm:$0xff]
        %v222 = vld [vmem:[%s207 + $0x58] sm:$0xff]
        %v223 = vld [vmem:[%s207 + $0x60] sm:$0xff]
        %v224 = vld [vmem:[%s207 + $0x68] sm:$0xff]
        %v225 = vld [vmem:[%s207 + $0x70] sm:$0xff]
        %v226 = vld [vmem:[%s207 + $0x78] sm:$0xff]
        %v227 = vld [vmem:[%s207 + $0x80] sm:$0xff]
        %v228 = vld [vmem:[%s207 + $0x88] sm:$0xff]
        %v229 = vld [vmem:[%s207 + $0x90] sm:$0xff]
        %v230 = vld [vmem:[%s207 + $0x98] sm:$0xff]
        %v231 = vld [vmem:[%s207 + $0xa0] sm:$0xff]
        %v232 = vld [vmem:[%s207 + $0xa8] sm:$0xff]
        %v233 = vld [vmem:[%s207 + $0xb0] sm:$0xff]
        %v234 = vld [vmem:[%s207 + $0xb8] sm:$0xff]
        %v235 = vld [vmem:[%s207 + $0xc0] sm:$0xff]
        %v236 = vld [vmem:[%s207 + $0xc8] sm:$0xff]
        %v237 = vld [vmem:[%s207 + $0xd0] sm:$0xff]
        %v238 = vld [vmem:[%s207 + $0xd8] sm:$0xff]
        %v239 = vld [vmem:[%s207 + $0xe0] sm:$0xff]
        %v240 = vld [vmem:[%s207 + $0xe8] sm:$0xff]
        %v241 = vld [vmem:[%s207 + $0xf0] sm:$0xff]
        %v242 = vld [vmem:[%s207 + $0xf8] sm:$0xff]
        %v243 = vld [vmem:[%s1] sm:$0xff]
        %v244 = vld [vmem:[%s2] sm:$0x3]
        %v246 = vlaneseq
        %v247 = vshrl.u32 %v246, 7
        %v248 = vsub.s32 0, %v247
        %v249 = vrot.slane %v244, %v248
        %v250 = vlaneseq
        %v251 = vshrl.u32 %v250, 7
        %v252 = vsub.s32 1, %v251
        %v253 = vrot.slane %v244, %v252
        %v257 = vcombine.high %v243, %v243
        %vm258 = vcmask 31744
        %v260 = vsel %vm258, %v211, 0
        %v263 = vsel %vm258, %v212, 0
        %v266 = vsel %vm258, %v213, 0
        %v269 = vsel %vm258, %v214, 0
        %v272 = vsel %vm258, %v215, 0
        %v275 = vsel %vm258, %v216, 0
        %v278 = vsel %vm258, %v217, 0
        %v281 = vsel %vm258, %v218, 0
        %v284 = vsel %vm258, %v219, 0
        %v287 = vsel %vm258, %v220, 0
        %v290 = vsel %vm258, %v221, 0
        %v293 = vsel %vm258, %v222, 0
        %v296 = vsel %vm258, %v223, 0
        %v299 = vsel %vm258, %v224, 0
        %v302 = vsel %vm258, %v225, 0
        %v305 = vsel %vm258, %v226, 0
        %v308 = vsel %vm258, %v227, 0
        %v311 = vsel %vm258, %v228, 0
        %v314 = vsel %vm258, %v229, 0
        %v317 = vsel %vm258, %v230, 0
        %v320 = vsel %vm258, %v231, 0
        %v323 = vsel %vm258, %v232, 0
        %v326 = vsel %vm258, %v233, 0
        %v329 = vsel %vm258, %v234, 0
        %v332 = vsel %vm258, %v235, 0
        %v335 = vsel %vm258, %v236, 0
        %v338 = vsel %vm258, %v237, 0
        %v341 = vsel %vm258, %v238, 0
        %v344 = vsel %vm258, %v239, 0
        %v347 = vsel %vm258, %v240, 0
        %v350 = vsel %vm258, %v241, 0
        %v353 = vsel %vm258, %v242, 0
        %vm355 = vcmask 1043456
        %v356 = vsel %vm355, %v243, 0
        %v358 = vsel %vm355, %v257, 0
        %360 = vmatprep.subr.mxu0 0.0
        %361 = vmatpush1.msra.mxu0 0.0
        %362 = vmatprep.subr.mxu0 0.0
        %363 = vmatpush1.msra.mxu0 0.0
        %364 = vmatprep.subr.mxu0 0.0
        %365 = vmatpush1.msra.mxu0 0.0
        %366 = vmatprep.subr.mxu0 0.0
        %367 = vmatpush1.msra.mxu0 0.0
        %368 = vmatprep.subr.mxu0 0.0
        %369 = vmatpush1.msra.mxu0 0.0
        %370 = vmatprep.subr.mxu0 0.0
        %371 = vmatpush1.msra.mxu0 0.0
        %372 = vmatprep.subr.mxu0 0.0
        %373 = vmatpush1.msra.mxu0 0.0
        %374 = vmatprep.subr.mxu0 0.0
        %375 = vmatpush1.msra.mxu0 0.0
        %376 = vmatprep.subr.mxu0 0.0
        %377 = vmatpush1.msra.mxu0 0.0
        %378 = vmatprep.subr.mxu0 0.0
        %379 = vmatpush1.msra.mxu0 0.0
        %380 = vmatprep.subr.mxu0 0.0
        %381 = vmatpush1.msra.mxu0 0.0
        %382 = vmatprep.subr.mxu0 0.0
        %383 = vmatpush1.msra.mxu0 0.0
        %384 = vmatprep.subr.mxu0 0.0
        %385 = vmatpush1.msra.mxu0 0.0
        %386 = vmatprep.subr.mxu0 0.0
        %387 = vmatpush1.msra.mxu0 0.0
        %388 = vmatprep.subr.mxu0 0.0
        %389 = vmatpush1.msra.mxu0 0.0
        %390 = vmatprep.subr.mxu0 %v358
        %391 = vmatpush1.msra.mxu0 %v356
        %392 = vmatprep.subr.mxu0 0.0
        %393 = vmatpush2.msra.mxu0 0.0
        %394 = vmatprep.subr.mxu0 0.0
        %395 = vmatpush2.msra.mxu0 0.0
        %396 = vmatprep.subr.mxu0 0.0
        %397 = vmatpush2.msra.mxu0 0.0
        %398 = vmatprep.subr.mxu0 0.0
        %399 = vmatpush2.msra.mxu0 0.0
        %400 = vmatprep.subr.mxu0 0.0
        %401 = vmatpush2.msra.mxu0 0.0
        %402 = vmatprep.subr.mxu0 0.0
        %403 = vmatpush2.msra.mxu0 0.0
        %404 = vmatprep.subr.mxu0 0.0
        %405 = vmatpush2.msra.mxu0 0.0
        %406 = vmatprep.subr.mxu0 0.0
        %407 = vmatpush2.msra.mxu0 0.0
        %408 = vmatprep.subr.mxu0 0.0
        %409 = vmatpush2.msra.mxu0 0.0
        %410 = vmatprep.subr.mxu0 0.0
        %411 = vmatpush2.msra.mxu0 0.0
        %412 = vmatprep.subr.mxu0 0.0
        %413 = vmatpush2.msra.mxu0 0.0
        %414 = vmatprep.subr.mxu0 0.0
        %415 = vmatpush2.msra.mxu0 0.0
        %416 = vmatprep.subr.mxu0 0.0
        %417 = vmatpush2.msra.mxu0 0.0
        %418 = vmatprep.subr.mxu0 0.0
        %419 = vmatpush2.msra.mxu0 0.0
        %420 = vmatprep.subr.mxu0 0.0
        %421 = vmatpush2.msra.mxu0 0.0
        %422 = vmatprep.subr.mxu0 0.0
        %423 = vmatpush2.msra.mxu0 0.0
        %424 = vmatprep.mubr.f32.mxu0 0.0
        %425 = vmatmul.mubr.f32.gmra.mxu0 %v260
        %v426 = vpop.f32.mrf.mxu0
        %v427 = vadd.f32 %v249, %v426
        %v428 = vpop.f32.mrf.mxu0
        %v429 = vadd.f32 %v253, %v428
        %430 = vmatprep.mubr.f32.mxu0 0.0
        %431 = vmatmul.mubr.f32.gmra.mxu0 %v263
        %v432 = vpop.f32.mrf.mxu0
        %v433 = vadd.f32 %v249, %v432
        %v434 = vpop.f32.mrf.mxu0
        %v435 = vadd.f32 %v253, %v434
        %436 = vmatprep.mubr.f32.mxu0 0.0
        %437 = vmatmul.mubr.f32.gmra.mxu0 %v266
        %v438 = vpop.f32.mrf.mxu0
        %v439 = vadd.f32 %v249, %v438
        %v440 = vpop.f32.mrf.mxu0
        %v441 = vadd.f32 %v253, %v440
        %442 = vmatprep.mubr.f32.mxu0 0.0
        %443 = vmatmul.mubr.f32.gmra.mxu0 %v269
        %v444 = vpop.f32.mrf.mxu0
        %v445 = vadd.f32 %v249, %v444
        %v446 = vpop.f32.mrf.mxu0
        %v447 = vadd.f32 %v253, %v446
        %448 = vmatprep.mubr.f32.mxu0 0.0
        %449 = vmatmul.mubr.f32.gmra.mxu0 %v272
        %v450 = vpop.f32.mrf.mxu0
        %v451 = vadd.f32 %v249, %v450
        %v452 = vpop.f32.mrf.mxu0
        %v453 = vadd.f32 %v253, %v452
        %454 = vmatprep.mubr.f32.mxu0 0.0
        %455 = vmatmul.mubr.f32.gmra.mxu0 %v275
        %v456 = vpop.f32.mrf.mxu0
        %v457 = vadd.f32 %v249, %v456
        %v458 = vpop.f32.mrf.mxu0
        %v459 = vadd.f32 %v253, %v458
        %460 = vmatprep.mubr.f32.mxu0 0.0
        %461 = vmatmul.mubr.f32.gmra.mxu0 %v278
        %v462 = vpop.f32.mrf.mxu0
        %v463 = vadd.f32 %v249, %v462
        %v464 = vpop.f32.mrf.mxu0
        %v465 = vadd.f32 %v253, %v464
        %466 = vmatprep.mubr.f32.mxu0 0.0
        %467 = vmatmul.mubr.f32.gmra.mxu0 %v281
        %v468 = vpop.f32.mrf.mxu0
        %v469 = vadd.f32 %v249, %v468
        %v470 = vpop.f32.mrf.mxu0
        %v471 = vadd.f32 %v253, %v470
        %472 = vmatprep.mubr.f32.mxu0 0.0
        %473 = vmatmul.mubr.f32.gmra.mxu0 %v284
        %v474 = vpop.f32.mrf.mxu0
        %v475 = vadd.f32 %v249, %v474
        %v476 = vpop.f32.mrf.mxu0
        %v477 = vadd.f32 %v253, %v476
        %478 = vmatprep.mubr.f32.mxu0 0.0
        %479 = vmatmul.mubr.f32.gmra.mxu0 %v287
        %v480 = vpop.f32.mrf.mxu0
        %v481 = vadd.f32 %v249, %v480
        %v482 = vpop.f32.mrf.mxu0
        %v483 = vadd.f32 %v253, %v482
        %484 = vmatprep.mubr.f32.mxu0 0.0
        %485 = vmatmul.mubr.f32.gmra.mxu0 %v290
        %v486 = vpop.f32.mrf.mxu0
        %v487 = vadd.f32 %v249, %v486
        %v488 = vpop.f32.mrf.mxu0
        %v489 = vadd.f32 %v253, %v488
        %490 = vmatprep.mubr.f32.mxu0 0.0
        %491 = vmatmul.mubr.f32.gmra.mxu0 %v293
        %v492 = vpop.f32.mrf.mxu0
        %v493 = vadd.f32 %v249, %v492
        %v494 = vpop.f32.mrf.mxu0
        %v495 = vadd.f32 %v253, %v494
        %496 = vmatprep.mubr.f32.mxu0 0.0
        %497 = vmatmul.mubr.f32.gmra.mxu0 %v296
        %v498 = vpop.f32.mrf.mxu0
        %v499 = vadd.f32 %v249, %v498
        %v500 = vpop.f32.mrf.mxu0
        %v501 = vadd.f32 %v253, %v500
        %502 = vmatprep.mubr.f32.mxu0 0.0
        %503 = vmatmul.mubr.f32.gmra.mxu0 %v299
        %v504 = vpop.f32.mrf.mxu0
        %v505 = vadd.f32 %v249, %v504
        %v506 = vpop.f32.mrf.mxu0
        %v507 = vadd.f32 %v253, %v506
        %508 = vmatprep.mubr.f32.mxu0 0.0
        %509 = vmatmul.mubr.f32.gmra.mxu0 %v302
        %v510 = vpop.f32.mrf.mxu0
        %v511 = vadd.f32 %v249, %v510
        %v512 = vpop.f32.mrf.mxu0
        %v513 = vadd.f32 %v253, %v512
        %514 = vmatprep.mubr.f32.mxu0 0.0
        %515 = vmatmul.mubr.f32.gmra.mxu0 %v305
        %v516 = vpop.f32.mrf.mxu0
        %v517 = vadd.f32 %v249, %v516
        %v518 = vpop.f32.mrf.mxu0
        %v519 = vadd.f32 %v253, %v518
        %520 = vmatprep.mubr.f32.mxu0 0.0
        %521 = vmatmul.mubr.f32.gmra.mxu0 %v308
        %v522 = vpop.f32.mrf.mxu0
        %v523 = vadd.f32 %v249, %v522
        %v524 = vpop.f32.mrf.mxu0
        %v525 = vadd.f32 %v253, %v524
        %526 = vmatprep.mubr.f32.mxu0 0.0
        %527 = vmatmul.mubr.f32.gmra.mxu0 %v311
        %v528 = vpop.f32.mrf.mxu0
        %v529 = vadd.f32 %v249, %v528
        %v530 = vpop.f32.mrf.mxu0
        %v531 = vadd.f32 %v253, %v530
        %532 = vmatprep.mubr.f32.mxu0 0.0
        %533 = vmatmul.mubr.f32.gmra.mxu0 %v314
        %v534 = vpop.f32.mrf.mxu0
        %v535 = vadd.f32 %v249, %v534
        %v536 = vpop.f32.mrf.mxu0
        %v537 = vadd.f32 %v253, %v536
        %538 = vmatprep.mubr.f32.mxu0 0.0
        %539 = vmatmul.mubr.f32.gmra.mxu0 %v317
        %v540 = vpop.f32.mrf.mxu0
        %v541 = vadd.f32 %v249, %v540
        %v542 = vpop.f32.mrf.mxu0
        %v543 = vadd.f32 %v253, %v542
        %544 = vmatprep.mubr.f32.mxu0 0.0
        %545 = vmatmul.mubr.f32.gmra.mxu0 %v320
        %v546 = vpop.f32.mrf.mxu0
        %v547 = vadd.f32 %v249, %v546
        %v548 = vpop.f32.mrf.mxu0
        %v549 = vadd.f32 %v253, %v548
        %550 = vmatprep.mubr.f32.mxu0 0.0
        %551 = vmatmul.mubr.f32.gmra.mxu0 %v323
        %v552 = vpop.f32.mrf.mxu0
        %v553 = vadd.f32 %v249, %v552
        %v554 = vpop.f32.mrf.mxu0
        %v555 = vadd.f32 %v253, %v554
        %556 = vmatprep.mubr.f32.mxu0 0.0
        %557 = vmatmul.mubr.f32.gmra.mxu0 %v326
        %v558 = vpop.f32.mrf.mxu0
        %v559 = vadd.f32 %v249, %v558
        %v560 = vpop.f32.mrf.mxu0
        %v561 = vadd.f32 %v253, %v560
        %562 = vmatprep.mubr.f32.mxu0 0.0
        %563 = vmatmul.mubr.f32.gmra.mxu0 %v329
        %v564 = vpop.f32.mrf.mxu0
        %v565 = vadd.f32 %v249, %v564
        %v566 = vpop.f32.mrf.mxu0
        %v567 = vadd.f32 %v253, %v566
        %568 = vmatprep.mubr.f32.mxu0 0.0
        %569 = vmatmul.mubr.f32.gmra.mxu0 %v332
        %v570 = vpop.f32.mrf.mxu0
        %v571 = vadd.f32 %v249, %v570
        %v572 = vpop.f32.mrf.mxu0
        %v573 = vadd.f32 %v253, %v572
        %574 = vmatprep.mubr.f32.mxu0 0.0
        %575 = vmatmul.mubr.f32.gmra.mxu0 %v335
        %v576 = vpop.f32.mrf.mxu0
        %v577 = vadd.f32 %v249, %v576
        %v578 = vpop.f32.mrf.mxu0
        %v579 = vadd.f32 %v253, %v578
        %580 = vmatprep.mubr.f32.mxu0 0.0
        %581 = vmatmul.mubr.f32.gmra.mxu0 %v338
        %v582 = vpop.f32.mrf.mxu0
        %v583 = vadd.f32 %v249, %v582
        %v584 = vpop.f32.mrf.mxu0
        %v585 = vadd.f32 %v253, %v584
        %586 = vmatprep.mubr.f32.mxu0 0.0
        %587 = vmatmul.mubr.f32.gmra.mxu0 %v341
        %v588 = vpop.f32.mrf.mxu0
        %v589 = vadd.f32 %v249, %v588
        %v590 = vpop.f32.mrf.mxu0
        %v591 = vadd.f32 %v253, %v590
        %592 = vmatprep.mubr.f32.mxu0 0.0
        %593 = vmatmul.mubr.f32.gmra.mxu0 %v344
        %v594 = vpop.f32.mrf.mxu0
        %v595 = vadd.f32 %v249, %v594
        %v596 = vpop.f32.mrf.mxu0
        %v597 = vadd.f32 %v253, %v596
        %598 = vmatprep.mubr.f32.mxu0 0.0
        %599 = vmatmul.mubr.f32.gmra.mxu0 %v347
        %v600 = vpop.f32.mrf.mxu0
        %v601 = vadd.f32 %v249, %v600
        %v602 = vpop.f32.mrf.mxu0
        %v603 = vadd.f32 %v253, %v602
        %604 = vmatprep.mubr.f32.mxu0 0.0
        %605 = vmatmul.mubr.f32.gmra.mxu0 %v350
        %v606 = vpop.f32.mrf.mxu0
        %v607 = vadd.f32 %v249, %v606
        %v608 = vpop.f32.mrf.mxu0
        %v609 = vadd.f32 %v253, %v608
        %610 = vmatprep.mubr.f32.mxu0 0.0
        %611 = vmatmul.mubr.f32.gmra.mxu0 %v353
        %v612 = vpop.f32.mrf.mxu0
        %v613 = vadd.f32 %v249, %v612
        %v614 = vpop.f32.mrf.mxu0
        %v615 = vadd.f32 %v253, %v614
        %616 = vdwg.mxu0
        %v617 = vxor.u32 %v427, 2147483648
        %v618 = vxor.u32 %v429, 2147483648
        %v619 = vxor.u32 %v433, 2147483648
        %v620 = vxor.u32 %v435, 2147483648
        %v621 = vxor.u32 %v439, 2147483648
        %v622 = vxor.u32 %v441, 2147483648
        %v623 = vxor.u32 %v445, 2147483648
        %v624 = vxor.u32 %v447, 2147483648
        %v625 = vxor.u32 %v451, 2147483648
        %v626 = vxor.u32 %v453, 2147483648
        %v627 = vxor.u32 %v457, 2147483648
        %v628 = vxor.u32 %v459, 2147483648
        %v629 = vxor.u32 %v463, 2147483648
        %v630 = vxor.u32 %v465, 2147483648
        %v631 = vxor.u32 %v469, 2147483648
        %v632 = vxor.u32 %v471, 2147483648
        %v633 = vxor.u32 %v475, 2147483648
        %v634 = vxor.u32 %v477, 2147483648
        %v635 = vxor.u32 %v481, 2147483648
        %v636 = vxor.u32 %v483, 2147483648
        %v637 = vxor.u32 %v487, 2147483648
        %v638 = vxor.u32 %v489, 2147483648
        %v639 = vxor.u32 %v493, 2147483648
        %v640 = vxor.u32 %v495, 2147483648
        %v641 = vxor.u32 %v499, 2147483648
        %v642 = vxor.u32 %v501, 2147483648
        %v643 = vxor.u32 %v505, 2147483648
        %v644 = vxor.u32 %v507, 2147483648
        %v645 = vxor.u32 %v511, 2147483648
        %v646 = vxor.u32 %v513, 2147483648
        %v647 = vxor.u32 %v517, 2147483648
        %v648 = vxor.u32 %v519, 2147483648
        %v649 = vxor.u32 %v523, 2147483648
        %v650 = vxor.u32 %v525, 2147483648
        %v651 = vxor.u32 %v529, 2147483648
        %v652 = vxor.u32 %v531, 2147483648
        %v653 = vxor.u32 %v535, 2147483648
        %v654 = vxor.u32 %v537, 2147483648
        %v655 = vxor.u32 %v541, 2147483648
        %v656 = vxor.u32 %v543, 2147483648
        %v657 = vxor.u32 %v547, 2147483648
        %v658 = vxor.u32 %v549, 2147483648
        %v659 = vxor.u32 %v553, 2147483648
        %v660 = vxor.u32 %v555, 2147483648
        %v661 = vxor.u32 %v559, 2147483648
        %v662 = vxor.u32 %v561, 2147483648
        %v663 = vxor.u32 %v565, 2147483648
        %v664 = vxor.u32 %v567, 2147483648
        %v665 = vxor.u32 %v571, 2147483648
        %v666 = vxor.u32 %v573, 2147483648
        %v667 = vxor.u32 %v577, 2147483648
        %v668 = vxor.u32 %v579, 2147483648
        %v669 = vxor.u32 %v583, 2147483648
        %v670 = vxor.u32 %v585, 2147483648
        %v671 = vxor.u32 %v589, 2147483648
        %v672 = vxor.u32 %v591, 2147483648
        %v673 = vxor.u32 %v595, 2147483648
        %v674 = vxor.u32 %v597, 2147483648
        %v675 = vxor.u32 %v601, 2147483648
        %v676 = vxor.u32 %v603, 2147483648
        %v677 = vxor.u32 %v607, 2147483648
        %v678 = vxor.u32 %v609, 2147483648
        %v679 = vxor.u32 %v613, 2147483648
        %v680 = vxor.u32 %v615, 2147483648
        %v681 = vmul.f32 %v617, 1.442695
        %v682 = vpow.pop %v681
        %v683 = vmul.f32 %v618, 1.442695
        %v684 = vpow.pop %v683
        %v685 = vmul.f32 %v619, 1.442695
        %v686 = vpow.pop %v685
        %v687 = vmul.f32 %v620, 1.442695
        %v688 = vpow.pop %v687
        %v689 = vmul.f32 %v621, 1.442695
        %v690 = vpow.pop %v689
        %v691 = vmul.f32 %v622, 1.442695
        %v692 = vpow.pop %v691
        %v693 = vmul.f32 %v623, 1.442695
        %v694 = vpow.pop %v693
        %v695 = vmul.f32 %v624, 1.442695
        %v696 = vpow.pop %v695
        %v697 = vmul.f32 %v625, 1.442695
        %v698 = vpow.pop %v697
        %v699 = vmul.f32 %v626, 1.442695
        %v700 = vpow.pop %v699
        %v701 = vmul.f32 %v627, 1.442695
        %v702 = vpow.pop %v701
        %v703 = vmul.f32 %v628, 1.442695
        %v704 = vpow.pop %v703
        %v705 = vmul.f32 %v629, 1.442695
        %v706 = vpow.pop %v705
        %v707 = vmul.f32 %v630, 1.442695
        %v708 = vpow.pop %v707
        %v709 = vmul.f32 %v631, 1.442695
        %v710 = vpow.pop %v709
        %v711 = vmul.f32 %v632, 1.442695
        %v712 = vpow.pop %v711
        %v713 = vmul.f32 %v633, 1.442695
        %v714 = vpow.pop %v713
        %v715 = vmul.f32 %v634, 1.442695
        %v716 = vpow.pop %v715
        %v717 = vmul.f32 %v635, 1.442695
        %v718 = vpow.pop %v717
        %v719 = vmul.f32 %v636, 1.442695
        %v720 = vpow.pop %v719
        %v721 = vmul.f32 %v637, 1.442695
        %v722 = vpow.pop %v721
        %v723 = vmul.f32 %v638, 1.442695
        %v724 = vpow.pop %v723
        %v725 = vmul.f32 %v639, 1.442695
        %v726 = vpow.pop %v725
        %v727 = vmul.f32 %v640, 1.442695
        %v728 = vpow.pop %v727
        %v729 = vmul.f32 %v641, 1.442695
        %v730 = vpow.pop %v729
        %v731 = vmul.f32 %v642, 1.442695
        %v732 = vpow.pop %v731
        %v733 = vmul.f32 %v643, 1.442695
        %v734 = vpow.pop %v733
        %v735 = vmul.f32 %v644, 1.442695
        %v736 = vpow.pop %v735
        %v737 = vmul.f32 %v645, 1.442695
        %v738 = vpow.pop %v737
        %v739 = vmul.f32 %v646, 1.442695
        %v740 = vpow.pop %v739
        %v741 = vmul.f32 %v647, 1.442695
        %v742 = vpow.pop %v741
        %v743 = vmul.f32 %v648, 1.442695
        %v744 = vpow.pop %v743
        %v745 = vmul.f32 %v649, 1.442695
        %v746 = vpow.pop %v745
        %v747 = vmul.f32 %v650, 1.442695
        %v748 = vpow.pop %v747
        %v749 = vmul.f32 %v651, 1.442695
        %v750 = vpow.pop %v749
        %v751 = vmul.f32 %v652, 1.442695
        %v752 = vpow.pop %v751
        %v753 = vmul.f32 %v653, 1.442695
        %v754 = vpow.pop %v753
        %v755 = vmul.f32 %v654, 1.442695
        %v756 = vpow.pop %v755
        %v757 = vmul.f32 %v655, 1.442695
        %v758 = vpow.pop %v757
        %v759 = vmul.f32 %v656, 1.442695
        %v760 = vpow.pop %v759
        %v761 = vmul.f32 %v657, 1.442695
        %v762 = vpow.pop %v761
        %v763 = vmul.f32 %v658, 1.442695
        %v764 = vpow.pop %v763
        %v765 = vmul.f32 %v659, 1.442695
        %v766 = vpow.pop %v765
        %v767 = vmul.f32 %v660, 1.442695
        %v768 = vpow.pop %v767
        %v769 = vmul.f32 %v661, 1.442695
        %v770 = vpow.pop %v769
        %v771 = vmul.f32 %v662, 1.442695
        %v772 = vpow.pop %v771
        %v773 = vmul.f32 %v663, 1.442695
        %v774 = vpow.pop %v773
        %v775 = vmul.f32 %v664, 1.442695
        %v776 = vpow.pop %v775
        %v777 = vmul.f32 %v665, 1.442695
        %v778 = vpow.pop %v777
        %v779 = vmul.f32 %v666, 1.442695
        %v780 = vpow.pop %v779
        %v781 = vmul.f32 %v667, 1.442695
        %v782 = vpow.pop %v781
        %v783 = vmul.f32 %v668, 1.442695
        %v784 = vpow.pop %v783
        %v785 = vmul.f32 %v669, 1.442695
        %v786 = vpow.pop %v785
        %v787 = vmul.f32 %v670, 1.442695
        %v788 = vpow.pop %v787
        %v789 = vmul.f32 %v671, 1.442695
        %v790 = vpow.pop %v789
        %v791 = vmul.f32 %v672, 1.442695
        %v792 = vpow.pop %v791
        %v793 = vmul.f32 %v673, 1.442695
        %v794 = vpow.pop %v793
        %v795 = vmul.f32 %v674, 1.442695
        %v796 = vpow.pop %v795
        %v797 = vmul.f32 %v675, 1.442695
        %v798 = vpow.pop %v797
        %v799 = vmul.f32 %v676, 1.442695
        %v800 = vpow.pop %v799
        %v801 = vmul.f32 %v677, 1.442695
        %v802 = vpow.pop %v801
        %v803 = vmul.f32 %v678, 1.442695
        %v804 = vpow.pop %v803
        %v805 = vmul.f32 %v679, 1.442695
        %v806 = vpow.pop %v805
        %v807 = vmul.f32 %v680, 1.442695
        %v808 = vpow.pop %v807
        %v809 = vadd.f32 %v682, 1.0
        %v810 = vadd.f32 %v684, 1.0
        %v811 = vadd.f32 %v686, 1.0
        %v812 = vadd.f32 %v688, 1.0
        %v813 = vadd.f32 %v690, 1.0
        %v814 = vadd.f32 %v692, 1.0
        %v815 = vadd.f32 %v694, 1.0
        %v816 = vadd.f32 %v696, 1.0
        %v817 = vadd.f32 %v698, 1.0
        %v818 = vadd.f32 %v700, 1.0
        %v819 = vadd.f32 %v702, 1.0
        %v820 = vadd.f32 %v704, 1.0
        %v821 = vadd.f32 %v706, 1.0
        %v822 = vadd.f32 %v708, 1.0
        %v823 = vadd.f32 %v710, 1.0
        %v824 = vadd.f32 %v712, 1.0
        %v825 = vadd.f32 %v714, 1.0
        %v826 = vadd.f32 %v716, 1.0
        %v827 = vadd.f32 %v718, 1.0
        %v828 = vadd.f32 %v720, 1.0
        %v829 = vadd.f32 %v722, 1.0
        %v830 = vadd.f32 %v724, 1.0
        %v831 = vadd.f32 %v726, 1.0
        %v832 = vadd.f32 %v728, 1.0
        %v833 = vadd.f32 %v730, 1.0
        %v834 = vadd.f32 %v732, 1.0
        %v835 = vadd.f32 %v734, 1.0
        %v836 = vadd.f32 %v736, 1.0
        %v837 = vadd.f32 %v738, 1.0
        %v838 = vadd.f32 %v740, 1.0
        %v839 = vadd.f32 %v742, 1.0
        %v840 = vadd.f32 %v744, 1.0
        %v841 = vadd.f32 %v746, 1.0
        %v842 = vadd.f32 %v748, 1.0
        %v843 = vadd.f32 %v750, 1.0
        %v844 = vadd.f32 %v752, 1.0
        %v845 = vadd.f32 %v754, 1.0
        %v846 = vadd.f32 %v756, 1.0
        %v847 = vadd.f32 %v758, 1.0
        %v848 = vadd.f32 %v760, 1.0
        %v849 = vadd.f32 %v762, 1.0
        %v850 = vadd.f32 %v764, 1.0
        %v851 = vadd.f32 %v766, 1.0
        %v852 = vadd.f32 %v768, 1.0
        %v853 = vadd.f32 %v770, 1.0
        %v854 = vadd.f32 %v772, 1.0
        %v855 = vadd.f32 %v774, 1.0
        %v856 = vadd.f32 %v776, 1.0
        %v857 = vadd.f32 %v778, 1.0
        %v858 = vadd.f32 %v780, 1.0
        %v859 = vadd.f32 %v782, 1.0
        %v860 = vadd.f32 %v784, 1.0
        %v861 = vadd.f32 %v786, 1.0
        %v862 = vadd.f32 %v788, 1.0
        %v863 = vadd.f32 %v790, 1.0
        %v864 = vadd.f32 %v792, 1.0
        %v865 = vadd.f32 %v794, 1.0
        %v866 = vadd.f32 %v796, 1.0
        %v867 = vadd.f32 %v798, 1.0
        %v868 = vadd.f32 %v800, 1.0
        %v869 = vadd.f32 %v802, 1.0
        %v870 = vadd.f32 %v804, 1.0
        %v871 = vadd.f32 %v806, 1.0
        %v872 = vadd.f32 %v808, 1.0
        %v873 = vrcp.pop %v809
        %v874 = vmul.f32 1.0, %v873
        %v875 = vrcp.pop %v810
        %v876 = vmul.f32 1.0, %v875
        %v877 = vrcp.pop %v811
        %v878 = vmul.f32 1.0, %v877
        %v879 = vrcp.pop %v812
        %v880 = vmul.f32 1.0, %v879
        %v881 = vrcp.pop %v813
        %v882 = vmul.f32 1.0, %v881
        %v883 = vrcp.pop %v814
        %v884 = vmul.f32 1.0, %v883
        %v885 = vrcp.pop %v815
        %v886 = vmul.f32 1.0, %v885
        %v887 = vrcp.pop %v816
        %v888 = vmul.f32 1.0, %v887
        %v889 = vrcp.pop %v817
        %v890 = vmul.f32 1.0, %v889
        %v891 = vrcp.pop %v818
        %v892 = vmul.f32 1.0, %v891
        %v893 = vrcp.pop %v819
        %v894 = vmul.f32 1.0, %v893
        %v895 = vrcp.pop %v820
        %v896 = vmul.f32 1.0, %v895
        %v897 = vrcp.pop %v821
        %v898 = vmul.f32 1.0, %v897
        %v899 = vrcp.pop %v822
        %v900 = vmul.f32 1.0, %v899
        %v901 = vrcp.pop %v823
        %v902 = vmul.f32 1.0, %v901
        %v903 = vrcp.pop %v824
        %v904 = vmul.f32 1.0, %v903
        %v905 = vrcp.pop %v825
        %v906 = vmul.f32 1.0, %v905
        %v907 = vrcp.pop %v826
        %v908 = vmul.f32 1.0, %v907
        %v909 = vrcp.pop %v827
        %v910 = vmul.f32 1.0, %v909
        %v911 = vrcp.pop %v828
        %v912 = vmul.f32 1.0, %v911
        %v913 = vrcp.pop %v829
        %v914 = vmul.f32 1.0, %v913
        %v915 = vrcp.pop %v830
        %v916 = vmul.f32 1.0, %v915
        %v917 = vrcp.pop %v831
        %v918 = vmul.f32 1.0, %v917
        %v919 = vrcp.pop %v832
        %v920 = vmul.f32 1.0, %v919
        %v921 = vrcp.pop %v833
        %v922 = vmul.f32 1.0, %v921
        %v923 = vrcp.pop %v834
        %v924 = vmul.f32 1.0, %v923
        %v925 = vrcp.pop %v835
        %v926 = vmul.f32 1.0, %v925
        %v927 = vrcp.pop %v836
        %v928 = vmul.f32 1.0, %v927
        %v929 = vrcp.pop %v837
        %v930 = vmul.f32 1.0, %v929
        %v931 = vrcp.pop %v838
        %v932 = vmul.f32 1.0, %v931
        %v933 = vrcp.pop %v839
        %v934 = vmul.f32 1.0, %v933
        %v935 = vrcp.pop %v840
        %v936 = vmul.f32 1.0, %v935
        %v937 = vrcp.pop %v841
        %v938 = vmul.f32 1.0, %v937
        %v939 = vrcp.pop %v842
        %v940 = vmul.f32 1.0, %v939
        %v941 = vrcp.pop %v843
        %v942 = vmul.f32 1.0, %v941
        %v943 = vrcp.pop %v844
        %v944 = vmul.f32 1.0, %v943
        %v945 = vrcp.pop %v845
        %v946 = vmul.f32 1.0, %v945
        %v947 = vrcp.pop %v846
        %v948 = vmul.f32 1.0, %v947
        %v949 = vrcp.pop %v847
        %v950 = vmul.f32 1.0, %v949
        %v951 = vrcp.pop %v848
        %v952 = vmul.f32 1.0, %v951
        %v953 = vrcp.pop %v849
        %v954 = vmul.f32 1.0, %v953
        %v955 = vrcp.pop %v850
        %v956 = vmul.f32 1.0, %v955
        %v957 = vrcp.pop %v851
        %v958 = vmul.f32 1.0, %v957
        %v959 = vrcp.pop %v852
        %v960 = vmul.f32 1.0, %v959
        %v961 = vrcp.pop %v853
        %v962 = vmul.f32 1.0, %v961
        %v963 = vrcp.pop %v854
        %v964 = vmul.f32 1.0, %v963
        %v965 = vrcp.pop %v855
        %v966 = vmul.f32 1.0, %v965
        %v967 = vrcp.pop %v856
        %v968 = vmul.f32 1.0, %v967
        %v969 = vrcp.pop %v857
        %v970 = vmul.f32 1.0, %v969
        %v971 = vrcp.pop %v858
        %v972 = vmul.f32 1.0, %v971
        %v973 = vrcp.pop %v859
        %v974 = vmul.f32 1.0, %v973
        %v975 = vrcp.pop %v860
        %v976 = vmul.f32 1.0, %v975
        %v977 = vrcp.pop %v861
        %v978 = vmul.f32 1.0, %v977
        %v979 = vrcp.pop %v862
        %v980 = vmul.f32 1.0, %v979
        %v981 = vrcp.pop %v863
        %v982 = vmul.f32 1.0, %v981
        %v983 = vrcp.pop %v864
        %v984 = vmul.f32 1.0, %v983
        %v985 = vrcp.pop %v865
        %v986 = vmul.f32 1.0, %v985
        %v987 = vrcp.pop %v866
        %v988 = vmul.f32 1.0, %v987
        %v989 = vrcp.pop %v867
        %v990 = vmul.f32 1.0, %v989
        %v991 = vrcp.pop %v868
        %v992 = vmul.f32 1.0, %v991
        %v993 = vrcp.pop %v869
        %v994 = vmul.f32 1.0, %v993
        %v995 = vrcp.pop %v870
        %v996 = vmul.f32 1.0, %v995
        %v997 = vrcp.pop %v871
        %v998 = vmul.f32 1.0, %v997
        %v999 = vrcp.pop %v872
        %v1000 = vmul.f32 1.0, %v999
        %v1001 = vmul.f32 %v427, %v874
        %v1002 = vmul.f32 %v429, %v876
        %v1003 = vmul.f32 %v433, %v878
        %v1004 = vmul.f32 %v435, %v880
        %v1005 = vmul.f32 %v439, %v882
        %v1006 = vmul.f32 %v441, %v884
        %v1007 = vmul.f32 %v445, %v886
        %v1008 = vmul.f32 %v447, %v888
        %v1009 = vmul.f32 %v451, %v890
        %v1010 = vmul.f32 %v453, %v892
        %v1011 = vmul.f32 %v457, %v894
        %v1012 = vmul.f32 %v459, %v896
        %v1013 = vmul.f32 %v463, %v898
        %v1014 = vmul.f32 %v465, %v900
        %v1015 = vmul.f32 %v469, %v902
        %v1016 = vmul.f32 %v471, %v904
        %v1017 = vmul.f32 %v475, %v906
        %v1018 = vmul.f32 %v477, %v908
        %v1019 = vmul.f32 %v481, %v910
        %v1020 = vmul.f32 %v483, %v912
        %v1021 = vmul.f32 %v487, %v914
        %v1022 = vmul.f32 %v489, %v916
        %v1023 = vmul.f32 %v493, %v918
        %v1024 = vmul.f32 %v495, %v920
        %v1025 = vmul.f32 %v499, %v922
        %v1026 = vmul.f32 %v501, %v924
        %v1027 = vmul.f32 %v505, %v926
        %v1028 = vmul.f32 %v507, %v928
        %v1029 = vmul.f32 %v511, %v930
        %v1030 = vmul.f32 %v513, %v932
        %v1031 = vmul.f32 %v517, %v934
        %v1032 = vmul.f32 %v519, %v936
        %v1033 = vmul.f32 %v523, %v938
        %v1034 = vmul.f32 %v525, %v940
        %v1035 = vmul.f32 %v529, %v942
        %v1036 = vmul.f32 %v531, %v944
        %v1037 = vmul.f32 %v535, %v946
        %v1038 = vmul.f32 %v537, %v948
        %v1039 = vmul.f32 %v541, %v950
        %v1040 = vmul.f32 %v543, %v952
        %v1041 = vmul.f32 %v547, %v954
        %v1042 = vmul.f32 %v549, %v956
        %v1043 = vmul.f32 %v553, %v958
        %v1044 = vmul.f32 %v555, %v960
        %v1045 = vmul.f32 %v559, %v962
        %v1046 = vmul.f32 %v561, %v964
        %v1047 = vmul.f32 %v565, %v966
        %v1048 = vmul.f32 %v567, %v968
        %v1049 = vmul.f32 %v571, %v970
        %v1050 = vmul.f32 %v573, %v972
        %v1051 = vmul.f32 %v577, %v974
        %v1052 = vmul.f32 %v579, %v976
        %v1053 = vmul.f32 %v583, %v978
        %v1054 = vmul.f32 %v585, %v980
        %v1055 = vmul.f32 %v589, %v982
        %v1056 = vmul.f32 %v591, %v984
        %v1057 = vmul.f32 %v595, %v986
        %v1058 = vmul.f32 %v597, %v988
        %v1059 = vmul.f32 %v601, %v990
        %v1060 = vmul.f32 %v603, %v992
        %v1061 = vmul.f32 %v607, %v994
        %v1062 = vmul.f32 %v609, %v996
        %v1063 = vmul.f32 %v613, %v998
        %v1064 = vmul.f32 %v615, %v1000
        %1065 = vst [vmem:[%s195] sm:$0xff] %v1001
        %1066 = vst [vmem:[%s195 + $0x8] sm:$0xff] %v1003
        %1067 = vst [vmem:[%s195 + $0x10] sm:$0xff] %v1005
        %1068 = vst [vmem:[%s195 + $0x18] sm:$0xff] %v1007
        %1069 = vst [vmem:[%s195 + $0x20] sm:$0xff] %v1009
        %1070 = vst [vmem:[%s195 + $0x28] sm:$0xff] %v1011
        %1071 = vst [vmem:[%s195 + $0x30] sm:$0xff] %v1013
        %1072 = vst [vmem:[%s195 + $0x38] sm:$0xff] %v1015
        %1073 = vst [vmem:[%s195 + $0x40] sm:$0xff] %v1017
        %1074 = vst [vmem:[%s195 + $0x48] sm:$0xff] %v1019
        %1075 = vst [vmem:[%s195 + $0x50] sm:$0xff] %v1021
        %1076 = vst [vmem:[%s195 + $0x58] sm:$0xff] %v1023
        %1077 = vst [vmem:[%s195 + $0x60] sm:$0xff] %v1025
        %1078 = vst [vmem:[%s195 + $0x68] sm:$0xff] %v1027
        %1079 = vst [vmem:[%s195 + $0x70] sm:$0xff] %v1029
        %1080 = vst [vmem:[%s195 + $0x78] sm:$0xff] %v1031
        %1081 = vst [vmem:[%s195 + $0x80] sm:$0xff] %v1033
        %1082 = vst [vmem:[%s195 + $0x88] sm:$0xff] %v1035
        %1083 = vst [vmem:[%s195 + $0x90] sm:$0xff] %v1037
        %1084 = vst [vmem:[%s195 + $0x98] sm:$0xff] %v1039
        %1085 = vst [vmem:[%s195 + $0xa0] sm:$0xff] %v1041
        %1086 = vst [vmem:[%s195 + $0xa8] sm:$0xff] %v1043
        %1087 = vst [vmem:[%s195 + $0xb0] sm:$0xff] %v1045
        %1088 = vst [vmem:[%s195 + $0xb8] sm:$0xff] %v1047
        %1089 = vst [vmem:[%s195 + $0xc0] sm:$0xff] %v1049
        %1090 = vst [vmem:[%s195 + $0xc8] sm:$0xff] %v1051
        %1091 = vst [vmem:[%s195 + $0xd0] sm:$0xff] %v1053
        %1092 = vst [vmem:[%s195 + $0xd8] sm:$0xff] %v1055
        %1093 = vst [vmem:[%s195 + $0xe0] sm:$0xff] %v1057
        %1094 = vst [vmem:[%s195 + $0xe8] sm:$0xff] %v1059
        %1095 = vst [vmem:[%s195 + $0xf0] sm:$0xff] %v1061
        %1096 = vst [vmem:[%s195 + $0xf8] sm:$0xff] %v1063
        %1097 = vst [vmem:[%s202] sm:$0xff] %v1002
        %1098 = vst [vmem:[%s202 + $0x8] sm:$0xff] %v1004
        %1099 = vst [vmem:[%s202 + $0x10] sm:$0xff] %v1006
        %1100 = vst [vmem:[%s202 + $0x18] sm:$0xff] %v1008
        %1101 = vst [vmem:[%s202 + $0x20] sm:$0xff] %v1010
        %1102 = vst [vmem:[%s202 + $0x28] sm:$0xff] %v1012
        %1103 = vst [vmem:[%s202 + $0x30] sm:$0xff] %v1014
        %1104 = vst [vmem:[%s202 + $0x38] sm:$0xff] %v1016
        %1105 = vst [vmem:[%s202 + $0x40] sm:$0xff] %v1018
        %1106 = vst [vmem:[%s202 + $0x48] sm:$0xff] %v1020
        %1107 = vst [vmem:[%s202 + $0x50] sm:$0xff] %v1022
        %1108 = vst [vmem:[%s202 + $0x58] sm:$0xff] %v1024
        %1109 = vst [vmem:[%s202 + $0x60] sm:$0xff] %v1026
        %1110 = vst [vmem:[%s202 + $0x68] sm:$0xff] %v1028
        %1111 = vst [vmem:[%s202 + $0x70] sm:$0xff] %v1030
        %1112 = vst [vmem:[%s202 + $0x78] sm:$0xff] %v1032
        %1113 = vst [vmem:[%s202 + $0x80] sm:$0xff] %v1034
        %1114 = vst [vmem:[%s202 + $0x88] sm:$0xff] %v1036
        %1115 = vst [vmem:[%s202 + $0x90] sm:$0xff] %v1038
        %1116 = vst [vmem:[%s202 + $0x98] sm:$0xff] %v1040
        %1117 = vst [vmem:[%s202 + $0xa0] sm:$0xff] %v1042
        %1118 = vst [vmem:[%s202 + $0xa8] sm:$0xff] %v1044
        %1119 = vst [vmem:[%s202 + $0xb0] sm:$0xff] %v1046
        %1120 = vst [vmem:[%s202 + $0xb8] sm:$0xff] %v1048
        %1121 = vst [vmem:[%s202 + $0xc0] sm:$0xff] %v1050
        %1122 = vst [vmem:[%s202 + $0xc8] sm:$0xff] %v1052
        %1123 = vst [vmem:[%s202 + $0xd0] sm:$0xff] %v1054
        %1124 = vst [vmem:[%s202 + $0xd8] sm:$0xff] %v1056
        %1125 = vst [vmem:[%s202 + $0xe0] sm:$0xff] %v1058
        %1126 = vst [vmem:[%s202 + $0xe8] sm:$0xff] %v1060
        %1127 = vst [vmem:[%s202 + $0xf0] sm:$0xff] %v1062
        %1128 = vst [vmem:[%s202 + $0xf8] sm:$0xff] %v1064
        %s1129 = sand.u32 %s98, 1
        %s1130 = scalar_lea.sflag [#allocation3], %s1129
        %s1131 = sand.u32 %s98, 1
        %s1132 = smul.addr %s1131, 256
        %s1133 = scalar_lea.vmem [#allocation2], %s1132
        %s1134 = sand.u32 %s124, 1
        %s1135 = scalar_lea.sflag [#allocation5], %s1134
        %s1136 = sand.u32 %s124, 1
        %s1137 = smul.addr %s1136, 256
        %s1138 = scalar_lea.vmem [#allocation4], %s1137
        // Predicated region
        $region33: #{tpu_custom_call.1} parent=31 // pred_check
          %p1139 = pneg %p108
        $region34: #{tpu_custom_call.1} parent=31 // pred_check_branch
          %1141 = sbr.rel (%p1139) target = $region36
        $region35: #{tpu_custom_call.1} parent=31 // pred_region
          %s1142 = smul.u32 32, %s22
          %s1144 = ssub.s32 4096, 4096
          %1145 = vsyncadd %s1130, %s1144
          %s1146 = smul.addr %s1142, 128
          %s1147 = scalar_lea.hbm %s3, %s1146
          %s1148 = sshll.u32 %s1133, 4
          %s1149 = int_to_ptr.vmem [resolvable:$true] %s1148
          %1154 = dma.vmem_to_hbm [thread:$0]  %s1149, 4096, %s1147, %s1130, 128, 128, 8
        $region36: #{tpu_custom_call.1} parent=31 // pred_fallthru
          _
        // Predicated region
        $region37: #{tpu_custom_call.1} parent=31 // pred_check
          %p1155 = pneg %p134
        $region38: #{tpu_custom_call.1} parent=31 // pred_check_branch
          %1157 = sbr.rel (%p1155) target = $region40
        $region39: #{tpu_custom_call.1} parent=31 // pred_region
          %s1158 = smul.u32 32, %s22
          %s1160 = ssub.s32 4096, 4096
          %1161 = vsyncadd %s1135, %s1160
          %s1162 = smul.addr %s1158, 128
          %s1163 = scalar_lea.hbm %s4, %s1162
          %s1164 = sshll.u32 %s1138, 4
          %s1165 = int_to_ptr.vmem [resolvable:$true] %s1164
          %1170 = dma.vmem_to_hbm [thread:$0]  %s1165, 4096, %s1163, %s1135, 128, 128, 8
        $region40: #{tpu_custom_call.1} parent=31 // pred_fallthru
          _
      $region32: #{tpu_custom_call.1} parent=5 // pred_fallthru
        _
      %p1171 = scmp.le.s32.totalorder 2, %s17
      // Predicated region
      $region41: #{tpu_custom_call.1} parent=5 // pred_check
        %p1172 = pneg %p1171
      $region42: #{tpu_custom_call.1} parent=5 // pred_check_branch
        %1174 = sbr.rel (%p1172) target = $region44
      $region43: #{tpu_custom_call.1} parent=5 // pred_region
        %s1175 = ssub.s32 %s17, 2
        // Predicated region
        $region45: #{tpu_custom_call.1} parent=43 // pred_check
          %p1176 = pneg %p114
        $region46: #{tpu_custom_call.1} parent=43 // pred_check_branch
          %1178 = sbr.rel (%p1176) target = $region48
        $region47: #{tpu_custom_call.1} parent=43 // pred_region
          %s1179 = sand.u32 %s99, 1
          %s1180 = scalar_lea.sflag [#allocation3], %s1179
          %s1181 = sand.u32 %s99, 1
          %s1182 = smul.addr %s1181, 256
          %s1183 = scalar_lea.vmem [#allocation2], %s1182
          %1184 = dma.done %s1180, 4096
        $region48: #{tpu_custom_call.1} parent=43 // pred_fallthru
          _
        // Predicated region
        $region49: #{tpu_custom_call.1} parent=43 // pred_check
          %p1185 = pneg %p140
        $region50: #{tpu_custom_call.1} parent=43 // pred_check_branch
          %1187 = sbr.rel (%p1185) target = $region52
        $region51: #{tpu_custom_call.1} parent=43 // pred_region
          %s1188 = sand.u32 %s125, 1
          %s1189 = scalar_lea.sflag [#allocation5], %s1188
          %s1190 = sand.u32 %s125, 1
          %s1191 = smul.addr %s1190, 256
          %s1192 = scalar_lea.vmem [#allocation4], %s1191
          %1193 = dma.done %s1189, 4096
        $region52: #{tpu_custom_call.1} parent=43 // pred_fallthru
          _
      $region44: #{tpu_custom_call.1} parent=5 // pred_fallthru
        _
    $region6: #{tpu_custom_call.1} parent=1 // loop_footer
      %s21 = sadd.s32 1, %s17
    $region7: #{tpu_custom_call.1} parent=1 // loop_footer_branch
      %16 = sbr.rel target = $region3
    $region8: #{tpu_custom_call.1} parent=1 // loop_exit
      _
    %1194 = vsyncpa [#allocation3], 1
    %s1195 = scalar_lea.sflag [#allocation3], 1
    %1196 = vsyncpa %s1195, 1
    %1197 = vsyncpa [#allocation5], 1
    %s1198 = scalar_lea.sflag [#allocation5], 1
    %1199 = vsyncpa %s1198, 1

</llo_original>
